<compile_context>
chip_gen: v6e
topology: v6e:2x2x1
jax: 0.10.0
libtpu: 0.0.40
codegen_flags: <defaults>
</compile_context>

<pallas_src>
import functools

import jax
import jax.numpy as jnp
from jax.experimental import pallas as pl
from jax.experimental.pallas import tpu as pltpu


def _round_up(x: int, m: int) -> int:
    return ((x + m - 1) // m) * m


def _cdiv(a: int, b: int) -> int:
    return (a + b - 1) // b


def _tpu_generation() -> int:
    """Best-effort TPU generation (5/6/7/...), 0 if unknown."""
    try:
        kind = jax.devices()[0].device_kind.lower()
    except Exception:
        return 0
    for g in (7, 6, 5, 4):
        if str(g) in kind:
            return g
    return 0


# ---------------------------------------------------------------------------
# Kernel: fused twin-Q MLP on one batch tile.
# ---------------------------------------------------------------------------
def _qnet_kernel(x_ref,
                 w1_ref, b1_ref,
                 w2a_ref, b2a_ref, w3a_ref,
                 w2b_ref, b2b_ref, w3b_ref,
                 b3_ref,
                 q_ref):
    h = w2a_ref.shape[0]

    # Layer 1: one fused (tb, in_dim) @ (in_dim, 2H) MXU matmul for both heads.
    h1 = jnp.dot(x_ref[...], w1_ref[...],
                 preferred_element_type=jnp.float32) + b1_ref[...]
    h1 = jnp.maximum(h1, 0.0).astype(w2a_ref.dtype)      # ReLU in f32, MXU feed in bf16

    # Layer 2: two dense (tb, H) @ (H, H) matmuls — no zero-padded block diagonal.
    h2a = jnp.dot(h1[:, :h], w2a_ref[...],
                  preferred_element_type=jnp.float32) + b2a_ref[...]
    h2b = jnp.dot(h1[:, h:], w2b_ref[...],
                  preferred_element_type=jnp.float32) + b2b_ref[...]
    h2a = jnp.maximum(h2a, 0.0)                           # keep f32: layer 3 is off-MXU
    h2b = jnp.maximum(h2b, 0.0)

    # Layer 3 on VPU/XLU: broadcast-multiply + lane reduction (avoids N=2 MXU waste).
    q1 = jnp.sum(h2a * w3a_ref[...], axis=-1, keepdims=True) + b3_ref[:, 0:1]
    q2 = jnp.sum(h2b * w3b_ref[...], axis=-1, keepdims=True) + b3_ref[:, 1:2]

    q_ref[:, 0:1] = q1.astype(q_ref.dtype)
    q_ref[:, 1:2] = q2.astype(q_ref.dtype)


# ---------------------------------------------------------------------------
# Parameter fusion (done once, outside the hot path).
# ---------------------------------------------------------------------------
def fuse_qnetwork_params(params, compute_dtype=jnp.bfloat16):
    """Fuse per-head PyTorch-style params into the kernel's layout.

    params: dict with "q1"/"q2", each (w1, b1, w2, b2, w3, b3) where
            w: (in_features, out_features), b: (1, out_features).
    Use compute_dtype=jnp.float32 if critic-value precision becomes an issue.
    """
    w1a, b1a, w2a, b2a, w3a, b3a = params["q1"]
    w1b, b1b, w2b, b2b, w3b, b3b = params["q2"]

    return {
        # layer 1 stays fused across heads: (in_dim, 2H)
        "w1": jnp.concatenate([w1a, w1b], axis=1).astype(compute_dtype),
        "b1": jnp.concatenate([b1a, b1b], axis=1).astype(jnp.float32),
        # layer 2: dense per-head weights (no zero padding)
        "w2a": w2a.astype(compute_dtype),
        "b2a": b2a.astype(jnp.float32),
        "w2b": w2b.astype(compute_dtype),
        "b2b": b2b.astype(jnp.float32),
        # layer 3 as row vectors (used on the VPU/XLU, kept in f32)
        "w3a": w3a.T.astype(jnp.float32),                 # (1, H)
        "w3b": w3b.T.astype(jnp.float32),                 # (1, H)
        "b3": jnp.concatenate([b3a, b3b], axis=1).astype(jnp.float32),  # (1, 2)
    }


# ---------------------------------------------------------------------------
# Wrapper
# ---------------------------------------------------------------------------
@functools.partial(jax.jit, static_argnames=("tile_b",))
def qnetwork_forward(state, action, fused, *, tile_b=None):
    """Returns (q1, q2), each (B, 1) float32."""
    B = state.shape[0]
    compute_dtype = fused["w1"].dtype
    in_dim = fused["w1"].shape[0]
    h = fused["w2a"].shape[0]

    # Single fused (state|action) operand -> one layer-1 MXU sweep.
    x = jnp.concatenate([state, action], axis=1).astype(compute_dtype)

    # Generation-aware batch tiling.
    gen = _tpu_generation()
    if tile_b is None:
        # v5e/v6e/other: one big tile (grid steps serialize on one TC);
        # v7x: smaller tiles so the batch is shared across its two TCs.
        tile_b = 1024 if gen >= 7 else 4096
    n_tiles = max(1, _cdiv(B, tile_b))
    if gen >= 7 and n_tiles == 1 and B >= 16:
        n_tiles = 2                                       # feed both v7x TensorCores
    tb = _round_up(_cdiv(B, n_tiles), 8)                  # <8 padded rows per tile
    Bp = n_tiles * tb
    if Bp != B:
        x = jnp.pad(x, ((0, Bp - B), (0, 0)))

    def resident(arr):                                    # full-array, constant-index block
        return pl.BlockSpec(arr.shape, lambda i: (0, 0))

    flops = 2 * Bp * (in_dim * 2 * h + 2 * h * h) + 4 * Bp * h
    bytes_accessed = (int(x.size) * x.dtype.itemsize
                      + sum(int(v.size) * v.dtype.itemsize for v in fused.values())
                      + Bp * 2 * 4)
    vmem_limit = (96 * 1024 * 1024) if gen in (5, 6) else (32 * 1024 * 1024)

    q = pl.pallas_call(
        _qnet_kernel,
        out_shape=jax.ShapeDtypeStruct((Bp, 2), jnp.float32),
        grid=(n_tiles,),
        in_specs=[
            pl.BlockSpec((tb, in_dim), lambda i: (i, 0)),
            resident(fused["w1"]), resident(fused["b1"]),
            resident(fused["w2a"]), resident(fused["b2a"]), resident(fused["w3a"]),
            resident(fused["w2b"]), resident(fused["b2b"]), resident(fused["w3b"]),
            resident(fused["b3"]),
        ],
        out_specs=pl.BlockSpec((tb, 2), lambda i: (i, 0)),
        compiler_params=pltpu.CompilerParams(
            dimension_semantics=("parallel",),
            vmem_limit_bytes=vmem_limit,
        ),
        cost_estimate=pl.CostEstimate(
            flops=int(flops), transcendentals=0, bytes_accessed=int(bytes_accessed)),
    )(x,
      fused["w1"], fused["b1"],
      fused["w2a"], fused["b2a"], fused["w3a"],
      fused["w2b"], fused["b2b"], fused["w3b"],
      fused["b3"])

    q = q[:B]
    return q[:, 0:1], q[:, 1:2]


# ---------------------------------------------------------------------------
# Init (mimics PyTorch nn.Linear default init), per-head layout like torch.
# ---------------------------------------------------------------------------
def init_qnetwork_params(key, state_dim, action_dim, hidden_dim):
    in_dim = state_dim + action_dim

    def linear(k, fan_in, fan_out):
        kw, kb = jax.random.split(k)
        bound = 1.0 / jnp.sqrt(float(fan_in))
        w = jax.random.uniform(kw, (fan_in, fan_out), jnp.float32, -bound, bound)
        b = jax.random.uniform(kb, (1, fan_out), jnp.float32, -bound, bound)
        return w, b

    keys = jax.random.split(key, 6)

    def head(k3):
        w1, b1 = linear(k3[0], in_dim, hidden_dim)
        w2, b2 = linear(k3[1], hidden_dim, hidden_dim)
        w3, b3 = linear(k3[2], hidden_dim, 1)
        return (w1, b1, w2, b2, w3, b3)

    return {"q1": head(keys[0:3]), "q2": head(keys[3:6])}


# ---------------------------------------------------------------------------
# References
# ---------------------------------------------------------------------------
def _reference_forward_f32(state, action, params):
    x = jnp.concatenate([state, action], axis=1)

    def mlp(p):
        w1, b1, w2, b2, w3, b3 = p
        h1 = jnp.maximum(x @ w1 + b1, 0.0)
        h2 = jnp.maximum(h1 @ w2 + b2, 0.0)
        return h2 @ w3 + b3

    return mlp(params["q1"]), mlp(params["q2"])


def _reference_forward_fused(state, action, fused):
    """Same math as the kernel (bf16 MXU operands, f32 accumulation, f32 layer 3)."""
    dt = fused["w1"].dtype
    h = fused["w2a"].shape[0]
    x = jnp.concatenate([state, action], axis=1).astype(dt)
    h1 = jnp.dot(x, fused["w1"], preferred_element_type=jnp.float32) + fused["b1"]
    h1 = jnp.maximum(h1, 0.0).astype(dt)
    h2a = jnp.maximum(
        jnp.dot(h1[:, :h], fused["w2a"], preferred_element_type=jnp.float32) + fused["b2a"], 0.0)
    h2b = jnp.maximum(
        jnp.dot(h1[:, h:], fused["w2b"], preferred_element_type=jnp.float32) + fused["b2b"], 0.0)
    q1 = jnp.sum(h2a * fused["w3a"], axis=-1, keepdims=True) + fused["b3"][:, 0:1]
    q2 = jnp.sum(h2b * fused["w3b"], axis=-1, keepdims=True) + fused["b3"][:, 1:2]
    return q1, q2


if __name__ == "__main__":
    B, STATE_DIM, ACTION_DIM, HIDDEN_DIM = 2, 8, 4, 32

    key = jax.random.PRNGKey(0)
    k_params, k_state, k_action = jax.random.split(key, 3)

    params = init_qnetwork_params(k_params, STATE_DIM, ACTION_DIM, HIDDEN_DIM)
    fused = fuse_qnetwork_params(params, compute_dtype=jnp.bfloat16)

    state = jax.random.normal(k_state, (B, STATE_DIM), jnp.float32)
    action = jax.random.normal(k_action, (B, ACTION_DIM), jnp.float32)

    q1, q2 = qnetwork_forward(state, action, fused)
    q1 = jax.block_until_ready(q1)
    q2 = jax.block_until_ready(q2)
    assert q1.shape == (B, 1) and q2.shape == (B, 1)

    # Tight check vs. a reference doing the identical fused math.
    q1_rf, q2_rf = _reference_forward_fused(state, action, fused)
    assert jnp.allclose(q1, q1_rf, atol=2e-3, rtol=2e-3)
    assert jnp.allclose(q2, q2_rf, atol=2e-3, rtol=2e-3)

    # Loose check vs. the full-f32 PyTorch-equivalent forward (bf16 quantization noise).
    q1_ref, q2_ref = _reference_forward_f32(state, action, params)
    assert jnp.allclose(q1, q1_ref, atol=5e-2, rtol=5e-2)
    assert jnp.allclose(q2, q2_ref, atol=5e-2, rtol=5e-2)

    print("KERNEL_OK")
</pallas_src>

<mosaic_0001>
module attributes {stable_mosaic.version = 11 : i64} {
  func.func @_qnet_kernel(%arg0: i32, %arg1: memref<8x12xbf16, #tpu.memory_space<vmem>>, %arg2: memref<12x64xbf16, #tpu.memory_space<vmem>>, %arg3: memref<1x64xf32, #tpu.memory_space<vmem>>, %arg4: memref<32x32xbf16, #tpu.memory_space<vmem>>, %arg5: memref<1x32xf32, #tpu.memory_space<vmem>>, %arg6: memref<1x32xf32, #tpu.memory_space<vmem>>, %arg7: memref<32x32xbf16, #tpu.memory_space<vmem>>, %arg8: memref<1x32xf32, #tpu.memory_space<vmem>>, %arg9: memref<1x32xf32, #tpu.memory_space<vmem>>, %arg10: memref<1x2xf32, #tpu.memory_space<vmem>>, %arg11: memref<8x2xf32, #tpu.memory_space<vmem>>) attributes {dimension_semantics = [#tpu.dimension_semantics<parallel>], iteration_bounds = array<i64: 1>, scalar_prefetch = 0 : i64, scratch_operands = 0 : i64, tpu.core_type = #tpu.core_type<tc>, window_params = [{transform_indices = @transform_0, window_bounds = array<i64: 8, 12>}, {pipeline_mode = #tpu.pipeline_mode<synchronous>, transform_indices = @transform_1, window_bounds = array<i64: 12, 64>}, {pipeline_mode = #tpu.pipeline_mode<synchronous>, transform_indices = @transform_2, window_bounds = array<i64: 1, 64>}, {pipeline_mode = #tpu.pipeline_mode<synchronous>, transform_indices = @transform_3, window_bounds = array<i64: 32, 32>}, {pipeline_mode = #tpu.pipeline_mode<synchronous>, transform_indices = @transform_4, window_bounds = array<i64: 1, 32>}, {pipeline_mode = #tpu.pipeline_mode<synchronous>, transform_indices = @transform_5, window_bounds = array<i64: 1, 32>}, {pipeline_mode = #tpu.pipeline_mode<synchronous>, transform_indices = @transform_6, window_bounds = array<i64: 32, 32>}, {pipeline_mode = #tpu.pipeline_mode<synchronous>, transform_indices = @transform_7, window_bounds = array<i64: 1, 32>}, {pipeline_mode = #tpu.pipeline_mode<synchronous>, transform_indices = @transform_8, window_bounds = array<i64: 1, 32>}, {pipeline_mode = #tpu.pipeline_mode<synchronous>, transform_indices = @transform_9, window_bounds = array<i64: 1, 2>}, {transform_indices = @transform_10, window_bounds = array<i64: 8, 2>}]} {
    %c0 = arith.constant 0 : index
    %c0_0 = arith.constant 0 : index
    %0 = vector.load %arg1[%c0, %c0_0] : memref<8x12xbf16, #tpu.memory_space<vmem>>, vector<8x12xbf16>
    %c0_1 = arith.constant 0 : index
    %c0_2 = arith.constant 0 : index
    %1 = vector.load %arg2[%c0_1, %c0_2] : memref<12x64xbf16, #tpu.memory_space<vmem>>, vector<12x64xbf16>
    %cst = arith.constant dense<0.000000e+00> : vector<8x64xf32>
    %2 = tpu.matmul %0, %1, %cst {dimension_numbers = #tpu.dot_dimension_numbers<[1], [0], [0], [1], [0, 0, 1, 1], [], []>} : vector<8x12xbf16>, vector<12x64xbf16>, vector<8x64xf32> -> vector<8x64xf32>
    %c0_3 = arith.constant 0 : index
    %c0_4 = arith.constant 0 : index
    %3 = vector.load %arg3[%c0_3, %c0_4] : memref<1x64xf32, #tpu.memory_space<vmem>>, vector<1x64xf32>
    %4 = vector.broadcast %3 : vector<1x64xf32> to vector<8x64xf32>
    %5 = arith.addf %2, %4 : vector<8x64xf32>
    %cst_5 = arith.constant 0.000000e+00 : f32
    %6 = vector.broadcast %cst_5 : f32 to vector<8x64xf32>
    %7 = arith.maximumf %5, %6 : vector<8x64xf32>
    %8 = arith.truncf %7 : vector<8x64xf32> to vector<8x64xbf16>
    %9 = vector.extract_strided_slice %8 {offsets = [0, 0], sizes = [8, 32], strides = [1, 1]} : vector<8x64xbf16> to vector<8x32xbf16>
    %c0_6 = arith.constant 0 : index
    %c0_7 = arith.constant 0 : index
    %10 = vector.load %arg4[%c0_6, %c0_7] : memref<32x32xbf16, #tpu.memory_space<vmem>>, vector<32x32xbf16>
    %cst_8 = arith.constant dense<0.000000e+00> : vector<8x32xf32>
    %11 = tpu.matmul %9, %10, %cst_8 {dimension_numbers = #tpu.dot_dimension_numbers<[1], [0], [0], [1], [0, 0, 1, 1], [], []>} : vector<8x32xbf16>, vector<32x32xbf16>, vector<8x32xf32> -> vector<8x32xf32>
    %c0_9 = arith.constant 0 : index
    %c0_10 = arith.constant 0 : index
    %12 = vector.load %arg5[%c0_9, %c0_10] : memref<1x32xf32, #tpu.memory_space<vmem>>, vector<1x32xf32>
    %13 = vector.broadcast %12 : vector<1x32xf32> to vector<8x32xf32>
    %14 = arith.addf %11, %13 : vector<8x32xf32>
    %15 = vector.extract_strided_slice %8 {offsets = [0, 32], sizes = [8, 32], strides = [1, 1]} : vector<8x64xbf16> to vector<8x32xbf16>
    %c0_11 = arith.constant 0 : index
    %c0_12 = arith.constant 0 : index
    %16 = vector.load %arg7[%c0_11, %c0_12] : memref<32x32xbf16, #tpu.memory_space<vmem>>, vector<32x32xbf16>
    %cst_13 = arith.constant dense<0.000000e+00> : vector<8x32xf32>
    %17 = tpu.matmul %15, %16, %cst_13 {dimension_numbers = #tpu.dot_dimension_numbers<[1], [0], [0], [1], [0, 0, 1, 1], [], []>} : vector<8x32xbf16>, vector<32x32xbf16>, vector<8x32xf32> -> vector<8x32xf32>
    %c0_14 = arith.constant 0 : index
    %c0_15 = arith.constant 0 : index
    %18 = vector.load %arg8[%c0_14, %c0_15] : memref<1x32xf32, #tpu.memory_space<vmem>>, vector<1x32xf32>
    %19 = vector.broadcast %18 : vector<1x32xf32> to vector<8x32xf32>
    %20 = arith.addf %17, %19 : vector<8x32xf32>
    %cst_16 = arith.constant 0.000000e+00 : f32
    %21 = vector.broadcast %cst_16 : f32 to vector<8x32xf32>
    %22 = arith.maximumf %14, %21 : vector<8x32xf32>
    %cst_17 = arith.constant 0.000000e+00 : f32
    %23 = vector.broadcast %cst_17 : f32 to vector<8x32xf32>
    %24 = arith.maximumf %20, %23 : vector<8x32xf32>
    %c0_18 = arith.constant 0 : index
    %c0_19 = arith.constant 0 : index
    %25 = vector.load %arg6[%c0_18, %c0_19] : memref<1x32xf32, #tpu.memory_space<vmem>>, vector<1x32xf32>
    %26 = vector.broadcast %25 : vector<1x32xf32> to vector<8x32xf32>
    %27 = arith.mulf %22, %26 : vector<8x32xf32>
    %cst_20 = arith.constant dense<0.000000e+00> : vector<8xf32>
    %28 = vector.multi_reduction <add>, %27, %cst_20 [1] : vector<8x32xf32> to vector<8xf32>
    %29 = vector.shape_cast %28 : vector<8xf32> to vector<8x1xf32>
    %c0_21 = arith.constant 0 : index
    %c0_22 = arith.constant 0 : index
    %30 = vector.load %arg10[%c0_21, %c0_22] : memref<1x2xf32, #tpu.memory_space<vmem>>, vector<1x1xf32>
    %31 = vector.broadcast %30 : vector<1x1xf32> to vector<8x1xf32>
    %32 = arith.addf %29, %31 : vector<8x1xf32>
    %c0_23 = arith.constant 0 : index
    %c0_24 = arith.constant 0 : index
    %33 = vector.load %arg9[%c0_23, %c0_24] : memref<1x32xf32, #tpu.memory_space<vmem>>, vector<1x32xf32>
    %34 = vector.broadcast %33 : vector<1x32xf32> to vector<8x32xf32>
    %35 = arith.mulf %24, %34 : vector<8x32xf32>
    %cst_25 = arith.constant dense<0.000000e+00> : vector<8xf32>
    %36 = vector.multi_reduction <add>, %35, %cst_25 [1] : vector<8x32xf32> to vector<8xf32>
    %37 = vector.shape_cast %36 : vector<8xf32> to vector<8x1xf32>
    %c0_26 = arith.constant 0 : index
    %c1 = arith.constant 1 : index
    %38 = vector.load %arg10[%c0_26, %c1] : memref<1x2xf32, #tpu.memory_space<vmem>>, vector<1x1xf32>
    %39 = vector.broadcast %38 : vector<1x1xf32> to vector<8x1xf32>
    %40 = arith.addf %37, %39 : vector<8x1xf32>
    %c0_27 = arith.constant 0 : index
    %c0_28 = arith.constant 0 : index
    %41 = vector.load %arg11[%c0_27, %c0_28] : memref<8x2xf32, #tpu.memory_space<vmem>>, vector<8x1xf32>
    tpu.vector_store %arg11[%c0_27, %c0_28], %32 {strides = array<i32>} : memref<8x2xf32, #tpu.memory_space<vmem>>, vector<8x1xf32>,
    %c0_29 = arith.constant 0 : index
    %c1_30 = arith.constant 1 : index
    %42 = vector.load %arg11[%c0_29, %c1_30] : memref<8x2xf32, #tpu.memory_space<vmem>>, vector<8x1xf32>
    tpu.vector_store %arg11[%c0_29, %c1_30], %40 {strides = array<i32>} : memref<8x2xf32, #tpu.memory_space<vmem>>, vector<8x1xf32>,
    return
  }
  func.func @transform_0(%arg0: i32) -> (i32, i32) {
    %c0_i32 = arith.constant 0 : i32
    %c0_i32_0 = arith.constant 0 : i32
    return %arg0, %c0_i32 : i32, i32
  }
  func.func @transform_1(%arg0: i32) -> (i32, i32) {
    %c0_i32 = arith.constant 0 : i32
    %c0_i32_0 = arith.constant 0 : i32
    %c0_i32_1 = arith.constant 0 : i32
    return %c0_i32, %c0_i32_0 : i32, i32
  }
  func.func @transform_2(%arg0: i32) -> (i32, i32) {
    %c0_i32 = arith.constant 0 : i32
    %c0_i32_0 = arith.constant 0 : i32
    %c0_i32_1 = arith.constant 0 : i32
    return %c0_i32, %c0_i32_0 : i32, i32
  }
  func.func @transform_3(%arg0: i32) -> (i32, i32) {
    %c0_i32 = arith.constant 0 : i32
    %c0_i32_0 = arith.constant 0 : i32
    %c0_i32_1 = arith.constant 0 : i32
    return %c0_i32, %c0_i32_0 : i32, i32
  }
  func.func @transform_4(%arg0: i32) -> (i32, i32) {
    %c0_i32 = arith.constant 0 : i32
    %c0_i32_0 = arith.constant 0 : i32
    %c0_i32_1 = arith.constant 0 : i32
    return %c0_i32, %c0_i32_0 : i32, i32
  }
  func.func @transform_5(%arg0: i32) -> (i32, i32) {
    %c0_i32 = arith.constant 0 : i32
    %c0_i32_0 = arith.constant 0 : i32
    %c0_i32_1 = arith.constant 0 : i32
    return %c0_i32, %c0_i32_0 : i32, i32
  }
  func.func @transform_6(%arg0: i32) -> (i32, i32) {
    %c0_i32 = arith.constant 0 : i32
    %c0_i32_0 = arith.constant 0 : i32
    %c0_i32_1 = arith.constant 0 : i32
    return %c0_i32, %c0_i32_0 : i32, i32
  }
  func.func @transform_7(%arg0: i32) -> (i32, i32) {
    %c0_i32 = arith.constant 0 : i32
    %c0_i32_0 = arith.constant 0 : i32
    %c0_i32_1 = arith.constant 0 : i32
    return %c0_i32, %c0_i32_0 : i32, i32
  }
  func.func @transform_8(%arg0: i32) -> (i32, i32) {
    %c0_i32 = arith.constant 0 : i32
    %c0_i32_0 = arith.constant 0 : i32
    %c0_i32_1 = arith.constant 0 : i32
    return %c0_i32, %c0_i32_0 : i32, i32
  }
  func.func @transform_9(%arg0: i32) -> (i32, i32) {
    %c0_i32 = arith.constant 0 : i32
    %c0_i32_0 = arith.constant 0 : i32
    %c0_i32_1 = arith.constant 0 : i32
    return %c0_i32, %c0_i32_0 : i32, i32
  }
  func.func @transform_10(%arg0: i32) -> (i32, i32) {
    %c0_i32 = arith.constant 0 : i32
    %c0_i32_0 = arith.constant 0 : i32
    return %arg0, %c0_i32 : i32, i32
  }
}

</mosaic_0001>

<llo_original>
// kernel: qnetwork_forward.1
$region0: #{qnetwork_forward.1}
  #allocation0 [shape = 'u32[]', space=smem, size = 0x4, offset = 0x4, fixed_abs, tag = 'smem constant byte address 0x4 - core index']
  #allocation1 [shape = 'u32[144,128]{1,0:T(1,128)}', space=vmem, size = 0x12000, scoped, tag = 'internal scratch']
  %s0 = inlined_call_operand.vmem [shape: bf16[8,12], index: 0, kind: input, shape index: {}]
  %s1 = inlined_call_operand.vmem [shape: bf16[12,64], index: 1, kind: input, shape index: {}]
  %s2 = inlined_call_operand.hbm [shape: f32[1,64], index: 2, kind: input, shape index: {}]
  %s3 = inlined_call_operand.vmem [shape: bf16[32,32], index: 3, kind: input, shape index: {}]
  %s4 = inlined_call_operand.hbm [shape: f32[1,32], index: 4, kind: input, shape index: {}]
  %s5 = inlined_call_operand.vmem [shape: f32[1,32], index: 5, kind: input, shape index: {}]
  %s6 = inlined_call_operand.hbm [shape: bf16[32,32], index: 6, kind: input, shape index: {}]
  %s7 = inlined_call_operand.hbm [shape: f32[1,32], index: 7, kind: input, shape index: {}]
  %s8 = inlined_call_operand.vmem [shape: f32[1,32], index: 8, kind: input, shape index: {}]
  %s9 = inlined_call_operand.hbm [shape: f32[1,2], index: 9, kind: input, shape index: {}]
  %s10 = inlined_call_operand.vmem [shape: f32[8,2], index: 10, kind: output, shape index: {}]
  %s11 = sld [smem:[#allocation0]]
  $region70: #{qnetwork_forward.1} parent=0
    _
  %s13 = ssub.s32 1, %s11
  %s14 = scalar_select 0, %s13, %s11
  $region1: #{qnetwork_forward.1} parent=0
    #allocation2 [shape = 'u8[512]{0}', space=vmem, size = 0x400, scoped, tag = 'input window, operand 2, single buffered']
    #allocation3 [shape = 's32[1]{0}', space=sflag, size = 0x4, scoped, tag = 'scoped memory for qnetwork_forward.1']
    #allocation4 [shape = 'u8[512]{0}', space=vmem, size = 0x400, scoped, tag = 'input window, operand 4, single buffered']
    #allocation5 [shape = 's32[1]{0}', space=sflag, size = 0x4, scoped, tag = 'scoped memory for qnetwork_forward.1']
    #allocation6 [shape = 'u8[8192]{0}', space=vmem, size = 0x2000, scoped, tag = 'input window, operand 6, single buffered']
    #allocation7 [shape = 'u8[512]{0}', space=vmem, size = 0x400, scoped, tag = 'input window, operand 7, single buffered']
    #allocation8 [shape = 's32[1]{0}', space=sflag, size = 0x4, scoped, tag = 'scoped memory for qnetwork_forward.1']
    #allocation9 [shape = 'u8[512]{0}', space=vmem, size = 0x400, scoped, tag = 'input window, operand 9, single buffered']
    %15 = vsyncpa [#allocation3], 0
    %16 = vsyncpa [#allocation5], 0
    %17 = vsyncpa [#allocation8], 0
    // Predicated region
    $region2: #{qnetwork_forward.1} parent=1 // pred_check
      _
    $region3: #{qnetwork_forward.1} parent=1 // pred_check_branch
      %19 = sbr.rel (0) target = $region5
    $region4: #{qnetwork_forward.1} parent=1 // pred_region
      _
    $region5: #{qnetwork_forward.1} parent=1 // pred_fallthru
      _
    // Predicated region
    $region6: #{qnetwork_forward.1} parent=1 // pred_check
      _
    $region7: #{qnetwork_forward.1} parent=1 // pred_check_branch
      %21 = sbr.rel (0) target = $region9
    $region8: #{qnetwork_forward.1} parent=1 // pred_region
      _
    $region9: #{qnetwork_forward.1} parent=1 // pred_fallthru
      _
    // Predicated region
    $region10: #{qnetwork_forward.1} parent=1 // pred_check
      _
    $region11: #{qnetwork_forward.1} parent=1 // pred_check_branch
      %23 = sbr.rel (0) target = $region13
    $region12: #{qnetwork_forward.1} parent=1 // pred_region
      %s25 = ssub.s32 16, 16
      %26 = vsyncadd [#allocation3], %s25
      %s28 = sshll.u32 [#allocation2], 4
      %s29 = int_to_ptr.vmem [resolvable:$true] %s28
      %31 = dma.hbm_to_vmem [thread:$0]  %s2, 16, %s29, [#allocation3]
    $region13: #{qnetwork_forward.1} parent=1 // pred_fallthru
      _
    // Predicated region
    $region14: #{qnetwork_forward.1} parent=1 // pred_check
      _
    $region15: #{qnetwork_forward.1} parent=1 // pred_check_branch
      %33 = sbr.rel (0) target = $region17
    $region16: #{qnetwork_forward.1} parent=1 // pred_region
      _
    $region17: #{qnetwork_forward.1} parent=1 // pred_fallthru
      _
    // Predicated region
    $region18: #{qnetwork_forward.1} parent=1 // pred_check
      _
    $region19: #{qnetwork_forward.1} parent=1 // pred_check_branch
      %35 = sbr.rel (0) target = $region21
    $region20: #{qnetwork_forward.1} parent=1 // pred_region
      %s37 = ssub.s32 16, 16
      %38 = vsyncadd [#allocation5], %s37
      %s40 = sshll.u32 [#allocation4], 4
      %s41 = int_to_ptr.vmem [resolvable:$true] %s40
      %43 = dma.hbm_to_vmem [thread:$0]  %s4, 16, %s41, [#allocation5]
    $region21: #{qnetwork_forward.1} parent=1 // pred_fallthru
      _
    // Predicated region
    $region22: #{qnetwork_forward.1} parent=1 // pred_check
      _
    $region23: #{qnetwork_forward.1} parent=1 // pred_check_branch
      %45 = sbr.rel (0) target = $region25
    $region24: #{qnetwork_forward.1} parent=1 // pred_region
      _
    $region25: #{qnetwork_forward.1} parent=1 // pred_fallthru
      _
    // Predicated region
    $region26: #{qnetwork_forward.1} parent=1 // pred_check
      _
    $region27: #{qnetwork_forward.1} parent=1 // pred_check_branch
      %47 = sbr.rel (0) target = $region29
    $region28: #{qnetwork_forward.1} parent=1 // pred_region
      %s49 = ssub.s32 256, 256
      %50 = vsyncadd [#allocation5], %s49
      %s51 = sshll.u32 [#allocation6], 4
      %s52 = int_to_ptr.vmem [resolvable:$true] %s51
      %57 = dma.hbm_to_vmem [thread:$0]  %s6, 256, %s52, [#allocation5], 64, 64, 4
    $region29: #{qnetwork_forward.1} parent=1 // pred_fallthru
      _
    // Predicated region
    $region30: #{qnetwork_forward.1} parent=1 // pred_check
      _
    $region31: #{qnetwork_forward.1} parent=1 // pred_check_branch
      %59 = sbr.rel (0) target = $region33
    $region32: #{qnetwork_forward.1} parent=1 // pred_region
      %s61 = ssub.s32 16, 16
      %62 = vsyncadd [#allocation8], %s61
      %s64 = sshll.u32 [#allocation7], 4
      %s65 = int_to_ptr.vmem [resolvable:$true] %s64
      %67 = dma.hbm_to_vmem [thread:$0]  %s7, 16, %s65, [#allocation8]
    $region33: #{qnetwork_forward.1} parent=1 // pred_fallthru
      _
    // Predicated region
    $region34: #{qnetwork_forward.1} parent=1 // pred_check
      _
    $region35: #{qnetwork_forward.1} parent=1 // pred_check_branch
      %69 = sbr.rel (0) target = $region37
    $region36: #{qnetwork_forward.1} parent=1 // pred_region
      _
    $region37: #{qnetwork_forward.1} parent=1 // pred_fallthru
      _
    // Predicated region
    $region38: #{qnetwork_forward.1} parent=1 // pred_check
      _
    $region39: #{qnetwork_forward.1} parent=1 // pred_check_branch
      %71 = sbr.rel (0) target = $region41
    $region40: #{qnetwork_forward.1} parent=1 // pred_region
      %s73 = ssub.s32 16, 16
      %74 = vsyncadd [#allocation8], %s73
      %s76 = sshll.u32 [#allocation9], 4
      %s77 = int_to_ptr.vmem [resolvable:$true] %s76
      %79 = dma.hbm_to_vmem [thread:$0]  %s9, 16, %s77, [#allocation8]
    $region41: #{qnetwork_forward.1} parent=1 // pred_fallthru
      _
    // Predicated region
    $region42: #{qnetwork_forward.1} parent=1 // pred_check
      _
    $region43: #{qnetwork_forward.1} parent=1 // pred_check_branch
      %81 = sbr.rel (0) target = $region45
    $region44: #{qnetwork_forward.1} parent=1 // pred_region
      %82 = dma.done [#allocation3], 16
    $region45: #{qnetwork_forward.1} parent=1 // pred_fallthru
      _
    // Predicated region
    $region46: #{qnetwork_forward.1} parent=1 // pred_check
      _
    $region47: #{qnetwork_forward.1} parent=1 // pred_check_branch
      %84 = sbr.rel (0) target = $region49
    $region48: #{qnetwork_forward.1} parent=1 // pred_region
      %85 = dma.done [#allocation5], 16
    $region49: #{qnetwork_forward.1} parent=1 // pred_fallthru
      _
    // Predicated region
    $region50: #{qnetwork_forward.1} parent=1 // pred_check
      _
    $region51: #{qnetwork_forward.1} parent=1 // pred_check_branch
      %87 = sbr.rel (0) target = $region53
    $region52: #{qnetwork_forward.1} parent=1 // pred_region
      %88 = dma.done [#allocation5], 256
    $region53: #{qnetwork_forward.1} parent=1 // pred_fallthru
      _
    // Predicated region
    $region54: #{qnetwork_forward.1} parent=1 // pred_check
      _
    $region55: #{qnetwork_forward.1} parent=1 // pred_check_branch
      %90 = sbr.rel (0) target = $region57
    $region56: #{qnetwork_forward.1} parent=1 // pred_region
      %91 = dma.done [#allocation8], 16
    $region57: #{qnetwork_forward.1} parent=1 // pred_fallthru
      _
    // Predicated region
    $region58: #{qnetwork_forward.1} parent=1 // pred_check
      _
    $region59: #{qnetwork_forward.1} parent=1 // pred_check_branch
      %93 = sbr.rel (0) target = $region61
    $region60: #{qnetwork_forward.1} parent=1 // pred_region
      %94 = dma.done [#allocation8], 16
    $region61: #{qnetwork_forward.1} parent=1 // pred_fallthru
      _
    %v96 = vld [vmem:[%s0] sm:$0xf]
    %v97 = vld [vmem:[%s1] sm:$0xf]
    %v98 = vld [vmem:[%s1 + $0x4] sm:$0x3]
    %v99 = vld [vmem:[#allocation2] sm:$0x1]
    %v101 = vlaneseq
    %v102 = vshrl.u32 %v101, 7
    %v103 = vsub.s32 0, %v102
    %v104 = vrot.slane %v99, %v103
    %v108 = vunpack.c.l.b16 %v97
    %v109 = vunpack.c.l.b16 %v98
    %v110 = vpack.c.b16 %v109, %v108
    %vm111 = vcmask 97280
    %v113 = vsel %vm111, %v96, 0
    %vm115 = vcmask 1045504
    %v117 = vsel %vm115, %v110, 0
    %119 = vmatprep.subr.bf16.mxu0 0
    %120 = vmatpush1.bf16.msra.mxu0 0
    %121 = vmatprep.subr.bf16.mxu0 0
    %122 = vmatpush1.bf16.msra.mxu0 0
    %123 = vmatprep.subr.bf16.mxu0 0
    %124 = vmatpush1.bf16.msra.mxu0 0
    %125 = vmatprep.subr.bf16.mxu0 0
    %126 = vmatpush1.bf16.msra.mxu0 0
    %127 = vmatprep.subr.bf16.mxu0 0
    %128 = vmatpush1.bf16.msra.mxu0 0
    %129 = vmatprep.subr.bf16.mxu0 0
    %130 = vmatpush1.bf16.msra.mxu0 0
    %131 = vmatprep.subr.bf16.mxu0 0
    %132 = vmatpush1.bf16.msra.mxu0 0
    %133 = vmatprep.subr.bf16.mxu0 0
    %134 = vmatpush1.bf16.msra.mxu0 %v117
    %135 = vmatprep.subr.bf16.mxu0 0
    %136 = vmatpush2.bf16.msra.mxu0 0
    %137 = vmatprep.subr.bf16.mxu0 0
    %138 = vmatpush2.bf16.msra.mxu0 0
    %139 = vmatprep.subr.bf16.mxu0 0
    %140 = vmatpush2.bf16.msra.mxu0 0
    %141 = vmatprep.subr.bf16.mxu0 0
    %142 = vmatpush2.bf16.msra.mxu0 0
    %143 = vmatprep.subr.bf16.mxu0 0
    %144 = vmatpush2.bf16.msra.mxu0 0
    %145 = vmatprep.subr.bf16.mxu0 0
    %146 = vmatpush2.bf16.msra.mxu0 0
    %147 = vmatprep.subr.bf16.mxu0 0
    %148 = vmatpush2.bf16.msra.mxu0 0
    %149 = vmatprep.subr.bf16.mxu0 0
    %150 = vmatpush2.bf16.msra.mxu0 0
    %151 = vmatprep.mubr.bf16.mxu0 0
    %152 = vmatmul.mubr.bf16.gmra.mxu0 %v113
    %v153 = vpop.f32.mrf.mxu0
    %v154 = vadd.f32 %v104, %v153
    %v155 = vpop.f32.mrf.mxu0
    %v156 = vpop.f32.mrf.mxu0
    %v157 = vpop.f32.mrf.mxu0
    %158 = vdwg.mxu0
    %v159 = vmax.f32 %v154, 0.0
    %v160 = vpack.c.bf16 %v159, %v159
    %v161 = vld [vmem:[%s3] sm:$0xf]
    %v162 = vld [vmem:[%s3 + $0x4] sm:$0xf]
    %v163 = vld [vmem:[%s3 + $0x8] sm:$0xf]
    %v164 = vld [vmem:[%s3 + $0xc] sm:$0xf]
    %v165 = vld [vmem:[#allocation4] sm:$0x1]
    %v167 = vlaneseq
    %v168 = vshrl.u32 %v167, 7
    %v169 = vsub.s32 0, %v168
    %v170 = vrot.slane %v165, %v169
    %v176 = vunpack.c.l.b16 %v161
    %v177 = vunpack.c.l.b16 %v162
    %v178 = vunpack.c.l.b16 %v163
    %v179 = vunpack.c.l.b16 %v164
    %v180 = vpack.c.b16 %v177, %v176
    %v181 = vpack.c.b16 %v179, %v178
    %vm184 = vcmask 261120
    %v186 = vsel %vm184, %v160, 0
    %188 = vmatprep.subr.bf16.mxu0 0
    %189 = vmatpush1.bf16.msra.mxu0 0
    %190 = vmatprep.subr.bf16.mxu0 0
    %191 = vmatpush1.bf16.msra.mxu0 0
    %192 = vmatprep.subr.bf16.mxu0 0
    %193 = vmatpush1.bf16.msra.mxu0 0
    %194 = vmatprep.subr.bf16.mxu0 0
    %195 = vmatpush1.bf16.msra.mxu0 0
    %196 = vmatprep.subr.bf16.mxu0 0
    %197 = vmatpush1.bf16.msra.mxu0 0
    %198 = vmatprep.subr.bf16.mxu0 0
    %199 = vmatpush1.bf16.msra.mxu0 0
    %200 = vmatprep.subr.bf16.mxu0 0
    %201 = vmatpush1.bf16.msra.mxu0 %v181
    %202 = vmatprep.subr.bf16.mxu0 0
    %203 = vmatpush1.bf16.msra.mxu0 %v180
    %204 = vmatprep.subr.bf16.mxu0 0
    %205 = vmatpush2.bf16.msra.mxu0 0
    %206 = vmatprep.subr.bf16.mxu0 0
    %207 = vmatpush2.bf16.msra.mxu0 0
    %208 = vmatprep.subr.bf16.mxu0 0
    %209 = vmatpush2.bf16.msra.mxu0 0
    %210 = vmatprep.subr.bf16.mxu0 0
    %211 = vmatpush2.bf16.msra.mxu0 0
    %212 = vmatprep.subr.bf16.mxu0 0
    %213 = vmatpush2.bf16.msra.mxu0 0
    %214 = vmatprep.subr.bf16.mxu0 0
    %215 = vmatpush2.bf16.msra.mxu0 0
    %216 = vmatprep.subr.bf16.mxu0 0
    %217 = vmatpush2.bf16.msra.mxu0 0
    %218 = vmatprep.subr.bf16.mxu0 0
    %219 = vmatpush2.bf16.msra.mxu0 0
    %220 = vmatprep.mubr.bf16.mxu0 0
    %221 = vmatmul.mubr.bf16.gmra.mxu0 %v186
    %v222 = vpop.f32.mrf.mxu0
    %v223 = vadd.f32 %v170, %v222
    %v224 = vpop.f32.mrf.mxu0
    %v225 = vpop.f32.mrf.mxu0
    %v226 = vpop.f32.mrf.mxu0
    %227 = vdwg.mxu0
    %v228 = vld [vmem:[#allocation6] sm:$0xf]
    %v229 = vld [vmem:[#allocation6 + $0x4] sm:$0xf]
    %v230 = vld [vmem:[#allocation6 + $0x8] sm:$0xf]
    %v231 = vld [vmem:[#allocation6 + $0xc] sm:$0xf]
    %v232 = vld [vmem:[#allocation7] sm:$0x1]
    %v234 = vlaneseq
    %v235 = vshrl.u32 %v234, 7
    %v236 = vsub.s32 0, %v235
    %v237 = vrot.slane %v232, %v236
    %240 = vrot.lane.b32.xlu0 %v160, 96
    %v241 = vpop.permute.xlu0 %240
    %v246 = vunpack.c.l.b16 %v228
    %v247 = vunpack.c.l.b16 %v229
    %v248 = vunpack.c.l.b16 %v230
    %v249 = vunpack.c.l.b16 %v231
    %v250 = vpack.c.b16 %v247, %v246
    %v251 = vpack.c.b16 %v249, %v248
    %v255 = vsel %vm184, %v241, 0
    %257 = vmatprep.subr.bf16.mxu0 0
    %258 = vmatpush1.bf16.msra.mxu0 0
    %259 = vmatprep.subr.bf16.mxu0 0
    %260 = vmatpush1.bf16.msra.mxu0 0
    %261 = vmatprep.subr.bf16.mxu0 0
    %262 = vmatpush1.bf16.msra.mxu0 0
    %263 = vmatprep.subr.bf16.mxu0 0
    %264 = vmatpush1.bf16.msra.mxu0 0
    %265 = vmatprep.subr.bf16.mxu0 0
    %266 = vmatpush1.bf16.msra.mxu0 0
    %267 = vmatprep.subr.bf16.mxu0 0
    %268 = vmatpush1.bf16.msra.mxu0 0
    %269 = vmatprep.subr.bf16.mxu0 0
    %270 = vmatpush1.bf16.msra.mxu0 %v251
    %271 = vmatprep.subr.bf16.mxu0 0
    %272 = vmatpush1.bf16.msra.mxu0 %v250
    %273 = vmatprep.subr.bf16.mxu0 0
    %274 = vmatpush2.bf16.msra.mxu0 0
    %275 = vmatprep.subr.bf16.mxu0 0
    %276 = vmatpush2.bf16.msra.mxu0 0
    %277 = vmatprep.subr.bf16.mxu0 0
    %278 = vmatpush2.bf16.msra.mxu0 0
    %279 = vmatprep.subr.bf16.mxu0 0
    %280 = vmatpush2.bf16.msra.mxu0 0
    %281 = vmatprep.subr.bf16.mxu0 0
    %282 = vmatpush2.bf16.msra.mxu0 0
    %283 = vmatprep.subr.bf16.mxu0 0
    %284 = vmatpush2.bf16.msra.mxu0 0
    %285 = vmatprep.subr.bf16.mxu0 0
    %286 = vmatpush2.bf16.msra.mxu0 0
    %287 = vmatprep.subr.bf16.mxu0 0
    %288 = vmatpush2.bf16.msra.mxu0 0
    %289 = vmatprep.mubr.bf16.mxu0 0
    %290 = vmatmul.mubr.bf16.gmra.mxu0 %v255
    %v291 = vpop.f32.mrf.mxu0
    %v292 = vadd.f32 %v237, %v291
    %v293 = vpop.f32.mrf.mxu0
    %v294 = vpop.f32.mrf.mxu0
    %v295 = vpop.f32.mrf.mxu0
    %296 = vdwg.mxu0
    %v297 = vmax.f32 %v223, 0.0
    %v298 = vmax.f32 %v292, 0.0
    %v299 = vld [vmem:[%s5] sm:$0x1]
    %v301 = vlaneseq
    %v302 = vshrl.u32 %v301, 7
    %v303 = vsub.s32 0, %v302
    %v304 = vrot.slane %v299, %v303
    %v306 = vmul.f32 %v297, %v304
    %v307 = vsel %vm184, %v306, 0.0
    %308 = vadd.xlane.f32.xlu0 %v307
    %v309 = vpop.xlane.xlu0 %308
    %v310 = vld [vmem:[#allocation9] sm:$0x1]
    %v312 = vlaneseq
    %v313 = vshrl.u32 %v312, 7
    %v314 = vsub.s32 0, %v313
    %v315 = vrot.slane %v310, %v314
    %v317 = vadd.f32 %v309, %v315
    %v318 = vld [vmem:[%s8] sm:$0x1]
    %v320 = vlaneseq
    %v321 = vshrl.u32 %v320, 7
    %v322 = vsub.s32 0, %v321
    %v323 = vrot.slane %v318, %v322
    %v325 = vmul.f32 %v298, %v323
    %v326 = vsel %vm184, %v325, 0.0
    %327 = vadd.xlane.f32.xlu0 %v326
    %v328 = vpop.xlane.xlu0 %327
    %v329 = vadd.f32 %v328, %v315
    %vm330 = vcmask 7168
    %331 = vst.msk [vmem:[%s10] sm:$0xff] %vm330, %v317
    %vm332 = vcmask 15368
    %333 = vst.msk [vmem:[%s10] sm:$0xff] %vm332, %v329
    // Predicated region
    $region62: #{qnetwork_forward.1} parent=1 // pred_check
      _
    $region63: #{qnetwork_forward.1} parent=1 // pred_check_branch
      %335 = sbr.rel (0) target = $region65
    $region64: #{qnetwork_forward.1} parent=1 // pred_region
      _
    $region65: #{qnetwork_forward.1} parent=1 // pred_fallthru
      _
    // Predicated region
    $region66: #{qnetwork_forward.1} parent=1 // pred_check
      _
    $region67: #{qnetwork_forward.1} parent=1 // pred_check_branch
      %337 = sbr.rel (0) target = $region69
    $region68: #{qnetwork_forward.1} parent=1 // pred_region
      _
    $region69: #{qnetwork_forward.1} parent=1 // pred_fallthru
      _
    %338 = vsyncpa [#allocation3], 1
    %339 = vsyncpa [#allocation5], 1
    %340 = vsyncpa [#allocation8], 1

</llo_original>
